<compile_context>
chip_gen: v7x
topology: tpu7x:2x2x1
jax: 0.10.0
libtpu: 0.0.40
codegen_flags: <defaults>
</compile_context>

<pallas_src>
import functools

import jax
import jax.numpy as jnp
from jax import lax
from jax.experimental import pallas as pl
from jax.experimental.pallas import tpu as pltpu

# CFG.smooth_l1_beta in the original repo; fixed deterministically here.
SMOOTH_L1_BETA = 1.0
COS_EPS = 1e-8

_VMEM_LIMIT_BYTES = 32 * 1024 * 1024  # safe on v5e(128MiB)/v6e(128MiB)/v7x(64MiB)


# --------------------------------------------------------------------------- #
# Kernels
# --------------------------------------------------------------------------- #
def _smooth_l1_pairwise_kernel(xi_ref, xjt_ref, out_ref, *, beta, chunk):
    # xi_ref:  (tm, D)  row tile
    # xjt_ref: (D, tn)  column tile (pre-transposed in the wrapper)
    # out_ref: (tm, tn) pairwise mean smooth-L1 tile (lane-dense)
    tm, tn = out_ref.shape
    d_true = xi_ref.shape[1]          # true (unpadded) feature dim for the mean
    half_beta = 0.5 * beta
    inv_beta_half = 0.5 / beta
    inv_d = 1.0 / d_true

    # Process the output tile in lane chunks so the live accumulator stays small
    # (<= ~32 vregs) -> no register spills hitting the vector-store slot (v5e has
    # only one, shared with the output writeback).
    n_chunks = tn // chunk
    for c in range(n_chunks):
        lo, hi = c * chunk, (c + 1) * chunk
        acc = jnp.zeros((tm, chunk), jnp.float32)
        # D is tiny and static -> fully unrolled accumulation with static slices.
        for k in range(d_true):
            xik = xi_ref[:, k:k + 1].astype(jnp.float32)      # (tm, 1)
            xjk = xjt_ref[k:k + 1, lo:hi].astype(jnp.float32)  # (1, chunk)
            d = xik - xjk                                      # (tm, chunk)
            ad = jnp.abs(d)
            # torch.nn.functional.smooth_l1_loss(..., reduction='none', beta=beta)
            acc = acc + jnp.where(ad < beta, inv_beta_half * d * d, ad - half_beta)
        # mean over the feature dim
        out_ref[:, lo:hi] = (acc * inv_d).astype(out_ref.dtype)


def _cos_pairwise_kernel(xi_ref, xjt_ref, out_ref, *, eps):
    # 1 - CosineSimilarity(dim=feature) between all row pairs (tiled).
    xi = xi_ref[...].astype(jnp.float32)      # (tm, D)
    xjt = xjt_ref[...].astype(jnp.float32)    # (D, tn)
    # MXU matmul on natural layouts (no in-kernel transpose of the column tile).
    dots = lax.dot_general(
        xi, xjt, (((1,), (0,)), ((), ())),
        preferred_element_type=jnp.float32)    # (tm, tn)
    # Norms recomputed from the already-resident tiles (XLU/VPU reduce over the
    # tiny feature dim) instead of streaming two extra inputs per grid step.
    ni = jnp.sqrt(jnp.sum(xi * xi, axis=1, keepdims=True))   # (tm, 1)
    nj = jnp.sqrt(jnp.sum(xjt * xjt, axis=0, keepdims=True))  # (1, tn)
    # Clamp BEFORE inverting to keep the PyTorch eps semantics.
    denom = jnp.maximum(ni * nj, eps)                          # (tm, tn)
    # EUP approx reciprocal + one Newton step on the VPU (keeps 1e-4 tolerance
    # while removing the exact-divide sequence from the epilogue critical path).
    inv = pl.reciprocal(denom, approx=True)
    inv = inv * (2.0 - denom * inv)
    out_ref[...] = (1.0 - dots * inv).astype(out_ref.dtype)


# --------------------------------------------------------------------------- #
# Tile selection helpers
# --------------------------------------------------------------------------- #
def _largest_divisor_tile(n, unit, cap):
    """Largest t <= cap with t % unit == 0 and n % t == 0, else None."""
    best = None
    t = unit
    limit = min(n, cap)
    while t <= limit:
        if n % t == 0:
            best = t
        t += unit
    return best


def _pick_row_tile(b, cap):
    t = _largest_divisor_tile(b, 8, cap)
    return t if t is not None else b          # full extent is always legal


def _pick_col_tile(b, cap):
    # Lane dim must be a multiple of 128 or the full array extent (8,128 rule;
    # also keeps the output writeback on the unmasked-vst fast path).
    t = _largest_divisor_tile(b, 128, cap)
    return t if t is not None else b


def _ensure_multi_step(b, tm, tn):
    # v7x has 2 TensorCores: make sure a "parallel" grid axis has >= 2 steps
    # when that is cheaply possible (no effect on single-TC v5e/v6e).
    if (b // tm) * (b // tn) >= 2:
        return tm
    half = _largest_divisor_tile(b, 8, b // 2)
    return half if half is not None else tm


def _pick_lane_chunk(tm, tn, max_acc_elems=32 * 1024):
    """Lane-chunk width for the l1 accumulator (multiple of 128, divides tn)."""
    if tn % 128 != 0:
        return tn                              # tn == B (small) -> single chunk
    best = 128
    c = 128
    while c <= tn:
        if tn % c == 0 and tm * c <= max_acc_elems:
            best = c
        c += 128
    return best


# --------------------------------------------------------------------------- #
# Wrapper
# --------------------------------------------------------------------------- #
def label_difference_rot(rot, label_diff="l1", tm=None, tn=None):
    """Pallas implementation of LabelDifference_rot.forward(rot)."""
    B, D = rot.shape

    if label_diff == "l1":
        row_cap, col_cap = 256, 512       # VALU-bound: modest tiles, chunked acc
    elif label_diff == "cos":
        row_cap, col_cap = 512, 2048      # write-bound: big lane-dense tiles
    else:
        raise ValueError(label_diff)

    if tn is None:
        tn = _pick_col_tile(B, col_cap)
    if tm is None:
        tm = _pick_row_tile(B, row_cap)
        tm = _ensure_multi_step(B, tm, tn)

    assert B % tm == 0 and B % tn == 0, "tiles must divide the batch"
    assert tm % 8 == 0 or tm == B, "row tile must be a multiple of 8 or == B"
    assert tn % 128 == 0 or tn == B, "column tile must be a multiple of 128 or == B"

    # One XLA transpose outside the kernel: column tiles are (D, tn) so the
    # per-feature slice inside the kernel is a natural lane row.
    rot_t = rot.T

    grid = (B // tm, B // tn)
    out_shape = jax.ShapeDtypeStruct((B, B), jnp.float32)
    out_spec = pl.BlockSpec((tm, tn), lambda i, j: (i, j))
    cparams = pltpu.CompilerParams(
        dimension_semantics=("parallel", "parallel"),
        vmem_limit_bytes=_VMEM_LIMIT_BYTES)

    in_specs = [
        pl.BlockSpec((tm, D), lambda i, j: (i, 0)),   # row tile
        pl.BlockSpec((D, tn), lambda i, j: (0, j)),   # column tile (transposed)
    ]
    operands = (rot, rot_t)

    if label_diff == "l1":
        chunk = _pick_lane_chunk(tm, tn)
        kernel = functools.partial(
            _smooth_l1_pairwise_kernel, beta=SMOOTH_L1_BETA, chunk=chunk)
    else:  # 'cos'
        kernel = functools.partial(_cos_pairwise_kernel, eps=COS_EPS)

    return pl.pallas_call(
        kernel,
        out_shape=out_shape,
        grid=grid,
        in_specs=in_specs,
        out_specs=out_spec,
        compiler_params=cparams,
    )(*operands)


# --------------------------------------------------------------------------- #
# Pure-JAX references
# --------------------------------------------------------------------------- #
def _reference_l1(rot, beta=SMOOTH_L1_BETA):
    d = rot[:, None, :] - rot[None, :, :]
    ad = jnp.abs(d)
    loss = jnp.where(ad < beta, 0.5 * d * d / beta, ad - 0.5 * beta)
    return loss.mean(axis=2)


def _reference_cos(rot, eps=COS_EPS):
    dots = rot @ rot.T
    n = jnp.linalg.norm(rot, axis=-1, keepdims=True)
    return 1.0 - dots / jnp.maximum(n * n.T, eps)


if __name__ == "__main__":
    key = jax.random.PRNGKey(0)
    k0, k1 = jax.random.split(key)

    # Small case: flattened rotation labels (3x3 rotation matrix -> D = 9).
    B, D = 8, 9
    rot = jax.random.normal(k0, (B, D), dtype=jnp.float32)
    out_l1 = jax.block_until_ready(label_difference_rot(rot, label_diff="l1"))
    out_cos = jax.block_until_ready(label_difference_rot(rot, label_diff="cos"))
    assert out_l1.shape == (B, B) and out_cos.shape == (B, B)
    assert jnp.allclose(out_l1, _reference_l1(rot), atol=1e-5, rtol=1e-5)
    assert jnp.allclose(out_cos, _reference_cos(rot), atol=1e-4, rtol=1e-4)

    # Larger case exercising auto tile selection (lane-dense tn, >= 2 grid steps).
    B2 = 256
    rot2 = jax.random.normal(k1, (B2, D), dtype=jnp.float32)
    out2_l1 = jax.block_until_ready(label_difference_rot(rot2, label_diff="l1"))
    out2_cos = jax.block_until_ready(label_difference_rot(rot2, label_diff="cos"))
    assert jnp.allclose(out2_l1, _reference_l1(rot2), atol=1e-5, rtol=1e-5)
    assert jnp.allclose(out2_cos, _reference_cos(rot2), atol=1e-4, rtol=1e-4)

    # Explicit 2x2 grid of 128x128 tiles (user-override path).
    out3_l1 = jax.block_until_ready(
        label_difference_rot(rot2, label_diff="l1", tm=128, tn=128))
    out3_cos = jax.block_until_ready(
        label_difference_rot(rot2, label_diff="cos", tm=128, tn=128))
    assert jnp.allclose(out3_l1, _reference_l1(rot2), atol=1e-5, rtol=1e-5)
    assert jnp.allclose(out3_cos, _reference_cos(rot2), atol=1e-4, rtol=1e-4)

    print("KERNEL_OK")
</pallas_src>

<mosaic_0001>
module attributes {stable_mosaic.version = 11 : i64} {
  func.func @_smooth_l1_pairwise_kernel(%arg0: i32, %arg1: i32, %arg2: memref<8x9xf32, #tpu.memory_space<vmem>>, %arg3: memref<9x8xf32, #tpu.memory_space<vmem>>, %arg4: memref<8x8xf32, #tpu.memory_space<vmem>>) attributes {dimension_semantics = [#tpu.dimension_semantics<parallel>, #tpu.dimension_semantics<parallel>], iteration_bounds = array<i64: 1, 1>, scalar_prefetch = 0 : i64, scratch_operands = 0 : i64, tpu.core_type = #tpu.core_type<tc>, window_params = [{transform_indices = @transform_0, window_bounds = array<i64: 8, 9>}, {transform_indices = @transform_1, window_bounds = array<i64: 9, 8>}, {transform_indices = @transform_2, window_bounds = array<i64: 8, 8>}]} {
    %cst = arith.constant 0.000000e+00 : f32
    %0 = vector.broadcast %cst : f32 to vector<8x8xf32>
    %c0 = arith.constant 0 : index
    %c0_0 = arith.constant 0 : index
    %1 = vector.load %arg2[%c0, %c0_0] : memref<8x9xf32, #tpu.memory_space<vmem>>, vector<8x1xf32>
    %c0_1 = arith.constant 0 : index
    %c0_2 = arith.constant 0 : index
    %2 = vector.load %arg3[%c0_1, %c0_2] : memref<9x8xf32, #tpu.memory_space<vmem>>, vector<1x8xf32>
    %3 = vector.broadcast %1 : vector<8x1xf32> to vector<8x8xf32>
    %4 = vector.broadcast %2 : vector<1x8xf32> to vector<8x8xf32>
    %5 = arith.subf %3, %4 : vector<8x8xf32>
    %6 = math.absf %5 : vector<8x8xf32>
    %cst_3 = arith.constant 1.000000e+00 : f32
    %7 = vector.broadcast %cst_3 : f32 to vector<8x8xf32>
    %8 = arith.cmpf olt, %6, %7 : vector<8x8xf32>
    %cst_4 = arith.constant 5.000000e-01 : f32
    %9 = vector.broadcast %cst_4 : f32 to vector<8x8xf32>
    %10 = arith.mulf %9, %5 : vector<8x8xf32>
    %11 = arith.mulf %10, %5 : vector<8x8xf32>
    %cst_5 = arith.constant 5.000000e-01 : f32
    %12 = vector.broadcast %cst_5 : f32 to vector<8x8xf32>
    %13 = arith.subf %6, %12 : vector<8x8xf32>
    %14 = arith.select %8, %11, %13 : vector<8x8xi1>, vector<8x8xf32>
    %15 = arith.addf %0, %14 : vector<8x8xf32>
    %c0_6 = arith.constant 0 : index
    %c1 = arith.constant 1 : index
    %16 = vector.load %arg2[%c0_6, %c1] : memref<8x9xf32, #tpu.memory_space<vmem>>, vector<8x1xf32>
    %c1_7 = arith.constant 1 : index
    %c0_8 = arith.constant 0 : index
    %17 = vector.load %arg3[%c1_7, %c0_8] : memref<9x8xf32, #tpu.memory_space<vmem>>, vector<1x8xf32>
    %18 = vector.broadcast %16 : vector<8x1xf32> to vector<8x8xf32>
    %19 = vector.broadcast %17 : vector<1x8xf32> to vector<8x8xf32>
    %20 = arith.subf %18, %19 : vector<8x8xf32>
    %21 = math.absf %20 : vector<8x8xf32>
    %cst_9 = arith.constant 1.000000e+00 : f32
    %22 = vector.broadcast %cst_9 : f32 to vector<8x8xf32>
    %23 = arith.cmpf olt, %21, %22 : vector<8x8xf32>
    %cst_10 = arith.constant 5.000000e-01 : f32
    %24 = vector.broadcast %cst_10 : f32 to vector<8x8xf32>
    %25 = arith.mulf %24, %20 : vector<8x8xf32>
    %26 = arith.mulf %25, %20 : vector<8x8xf32>
    %cst_11 = arith.constant 5.000000e-01 : f32
    %27 = vector.broadcast %cst_11 : f32 to vector<8x8xf32>
    %28 = arith.subf %21, %27 : vector<8x8xf32>
    %29 = arith.select %23, %26, %28 : vector<8x8xi1>, vector<8x8xf32>
    %30 = arith.addf %15, %29 : vector<8x8xf32>
    %c0_12 = arith.constant 0 : index
    %c2 = arith.constant 2 : index
    %31 = vector.load %arg2[%c0_12, %c2] : memref<8x9xf32, #tpu.memory_space<vmem>>, vector<8x1xf32>
    %c2_13 = arith.constant 2 : index
    %c0_14 = arith.constant 0 : index
    %32 = vector.load %arg3[%c2_13, %c0_14] : memref<9x8xf32, #tpu.memory_space<vmem>>, vector<1x8xf32>
    %33 = vector.broadcast %31 : vector<8x1xf32> to vector<8x8xf32>
    %34 = vector.broadcast %32 : vector<1x8xf32> to vector<8x8xf32>
    %35 = arith.subf %33, %34 : vector<8x8xf32>
    %36 = math.absf %35 : vector<8x8xf32>
    %cst_15 = arith.constant 1.000000e+00 : f32
    %37 = vector.broadcast %cst_15 : f32 to vector<8x8xf32>
    %38 = arith.cmpf olt, %36, %37 : vector<8x8xf32>
    %cst_16 = arith.constant 5.000000e-01 : f32
    %39 = vector.broadcast %cst_16 : f32 to vector<8x8xf32>
    %40 = arith.mulf %39, %35 : vector<8x8xf32>
    %41 = arith.mulf %40, %35 : vector<8x8xf32>
    %cst_17 = arith.constant 5.000000e-01 : f32
    %42 = vector.broadcast %cst_17 : f32 to vector<8x8xf32>
    %43 = arith.subf %36, %42 : vector<8x8xf32>
    %44 = arith.select %38, %41, %43 : vector<8x8xi1>, vector<8x8xf32>
    %45 = arith.addf %30, %44 : vector<8x8xf32>
    %c0_18 = arith.constant 0 : index
    %c3 = arith.constant 3 : index
    %46 = vector.load %arg2[%c0_18, %c3] : memref<8x9xf32, #tpu.memory_space<vmem>>, vector<8x1xf32>
    %c3_19 = arith.constant 3 : index
    %c0_20 = arith.constant 0 : index
    %47 = vector.load %arg3[%c3_19, %c0_20] : memref<9x8xf32, #tpu.memory_space<vmem>>, vector<1x8xf32>
    %48 = vector.broadcast %46 : vector<8x1xf32> to vector<8x8xf32>
    %49 = vector.broadcast %47 : vector<1x8xf32> to vector<8x8xf32>
    %50 = arith.subf %48, %49 : vector<8x8xf32>
    %51 = math.absf %50 : vector<8x8xf32>
    %cst_21 = arith.constant 1.000000e+00 : f32
    %52 = vector.broadcast %cst_21 : f32 to vector<8x8xf32>
    %53 = arith.cmpf olt, %51, %52 : vector<8x8xf32>
    %cst_22 = arith.constant 5.000000e-01 : f32
    %54 = vector.broadcast %cst_22 : f32 to vector<8x8xf32>
    %55 = arith.mulf %54, %50 : vector<8x8xf32>
    %56 = arith.mulf %55, %50 : vector<8x8xf32>
    %cst_23 = arith.constant 5.000000e-01 : f32
    %57 = vector.broadcast %cst_23 : f32 to vector<8x8xf32>
    %58 = arith.subf %51, %57 : vector<8x8xf32>
    %59 = arith.select %53, %56, %58 : vector<8x8xi1>, vector<8x8xf32>
    %60 = arith.addf %45, %59 : vector<8x8xf32>
    %c0_24 = arith.constant 0 : index
    %c4 = arith.constant 4 : index
    %61 = vector.load %arg2[%c0_24, %c4] : memref<8x9xf32, #tpu.memory_space<vmem>>, vector<8x1xf32>
    %c4_25 = arith.constant 4 : index
    %c0_26 = arith.constant 0 : index
    %62 = vector.load %arg3[%c4_25, %c0_26] : memref<9x8xf32, #tpu.memory_space<vmem>>, vector<1x8xf32>
    %63 = vector.broadcast %61 : vector<8x1xf32> to vector<8x8xf32>
    %64 = vector.broadcast %62 : vector<1x8xf32> to vector<8x8xf32>
    %65 = arith.subf %63, %64 : vector<8x8xf32>
    %66 = math.absf %65 : vector<8x8xf32>
    %cst_27 = arith.constant 1.000000e+00 : f32
    %67 = vector.broadcast %cst_27 : f32 to vector<8x8xf32>
    %68 = arith.cmpf olt, %66, %67 : vector<8x8xf32>
    %cst_28 = arith.constant 5.000000e-01 : f32
    %69 = vector.broadcast %cst_28 : f32 to vector<8x8xf32>
    %70 = arith.mulf %69, %65 : vector<8x8xf32>
    %71 = arith.mulf %70, %65 : vector<8x8xf32>
    %cst_29 = arith.constant 5.000000e-01 : f32
    %72 = vector.broadcast %cst_29 : f32 to vector<8x8xf32>
    %73 = arith.subf %66, %72 : vector<8x8xf32>
    %74 = arith.select %68, %71, %73 : vector<8x8xi1>, vector<8x8xf32>
    %75 = arith.addf %60, %74 : vector<8x8xf32>
    %c0_30 = arith.constant 0 : index
    %c5 = arith.constant 5 : index
    %76 = vector.load %arg2[%c0_30, %c5] : memref<8x9xf32, #tpu.memory_space<vmem>>, vector<8x1xf32>
    %c5_31 = arith.constant 5 : index
    %c0_32 = arith.constant 0 : index
    %77 = vector.load %arg3[%c5_31, %c0_32] : memref<9x8xf32, #tpu.memory_space<vmem>>, vector<1x8xf32>
    %78 = vector.broadcast %76 : vector<8x1xf32> to vector<8x8xf32>
    %79 = vector.broadcast %77 : vector<1x8xf32> to vector<8x8xf32>
    %80 = arith.subf %78, %79 : vector<8x8xf32>
    %81 = math.absf %80 : vector<8x8xf32>
    %cst_33 = arith.constant 1.000000e+00 : f32
    %82 = vector.broadcast %cst_33 : f32 to vector<8x8xf32>
    %83 = arith.cmpf olt, %81, %82 : vector<8x8xf32>
    %cst_34 = arith.constant 5.000000e-01 : f32
    %84 = vector.broadcast %cst_34 : f32 to vector<8x8xf32>
    %85 = arith.mulf %84, %80 : vector<8x8xf32>
    %86 = arith.mulf %85, %80 : vector<8x8xf32>
    %cst_35 = arith.constant 5.000000e-01 : f32
    %87 = vector.broadcast %cst_35 : f32 to vector<8x8xf32>
    %88 = arith.subf %81, %87 : vector<8x8xf32>
    %89 = arith.select %83, %86, %88 : vector<8x8xi1>, vector<8x8xf32>
    %90 = arith.addf %75, %89 : vector<8x8xf32>
    %c0_36 = arith.constant 0 : index
    %c6 = arith.constant 6 : index
    %91 = vector.load %arg2[%c0_36, %c6] : memref<8x9xf32, #tpu.memory_space<vmem>>, vector<8x1xf32>
    %c6_37 = arith.constant 6 : index
    %c0_38 = arith.constant 0 : index
    %92 = vector.load %arg3[%c6_37, %c0_38] : memref<9x8xf32, #tpu.memory_space<vmem>>, vector<1x8xf32>
    %93 = vector.broadcast %91 : vector<8x1xf32> to vector<8x8xf32>
    %94 = vector.broadcast %92 : vector<1x8xf32> to vector<8x8xf32>
    %95 = arith.subf %93, %94 : vector<8x8xf32>
    %96 = math.absf %95 : vector<8x8xf32>
    %cst_39 = arith.constant 1.000000e+00 : f32
    %97 = vector.broadcast %cst_39 : f32 to vector<8x8xf32>
    %98 = arith.cmpf olt, %96, %97 : vector<8x8xf32>
    %cst_40 = arith.constant 5.000000e-01 : f32
    %99 = vector.broadcast %cst_40 : f32 to vector<8x8xf32>
    %100 = arith.mulf %99, %95 : vector<8x8xf32>
    %101 = arith.mulf %100, %95 : vector<8x8xf32>
    %cst_41 = arith.constant 5.000000e-01 : f32
    %102 = vector.broadcast %cst_41 : f32 to vector<8x8xf32>
    %103 = arith.subf %96, %102 : vector<8x8xf32>
    %104 = arith.select %98, %101, %103 : vector<8x8xi1>, vector<8x8xf32>
    %105 = arith.addf %90, %104 : vector<8x8xf32>
    %c0_42 = arith.constant 0 : index
    %c7 = arith.constant 7 : index
    %106 = vector.load %arg2[%c0_42, %c7] : memref<8x9xf32, #tpu.memory_space<vmem>>, vector<8x1xf32>
    %c7_43 = arith.constant 7 : index
    %c0_44 = arith.constant 0 : index
    %107 = vector.load %arg3[%c7_43, %c0_44] : memref<9x8xf32, #tpu.memory_space<vmem>>, vector<1x8xf32>
    %108 = vector.broadcast %106 : vector<8x1xf32> to vector<8x8xf32>
    %109 = vector.broadcast %107 : vector<1x8xf32> to vector<8x8xf32>
    %110 = arith.subf %108, %109 : vector<8x8xf32>
    %111 = math.absf %110 : vector<8x8xf32>
    %cst_45 = arith.constant 1.000000e+00 : f32
    %112 = vector.broadcast %cst_45 : f32 to vector<8x8xf32>
    %113 = arith.cmpf olt, %111, %112 : vector<8x8xf32>
    %cst_46 = arith.constant 5.000000e-01 : f32
    %114 = vector.broadcast %cst_46 : f32 to vector<8x8xf32>
    %115 = arith.mulf %114, %110 : vector<8x8xf32>
    %116 = arith.mulf %115, %110 : vector<8x8xf32>
    %cst_47 = arith.constant 5.000000e-01 : f32
    %117 = vector.broadcast %cst_47 : f32 to vector<8x8xf32>
    %118 = arith.subf %111, %117 : vector<8x8xf32>
    %119 = arith.select %113, %116, %118 : vector<8x8xi1>, vector<8x8xf32>
    %120 = arith.addf %105, %119 : vector<8x8xf32>
    %c0_48 = arith.constant 0 : index
    %c8 = arith.constant 8 : index
    %121 = vector.load %arg2[%c0_48, %c8] : memref<8x9xf32, #tpu.memory_space<vmem>>, vector<8x1xf32>
    %c8_49 = arith.constant 8 : index
    %c0_50 = arith.constant 0 : index
    %122 = vector.load %arg3[%c8_49, %c0_50] : memref<9x8xf32, #tpu.memory_space<vmem>>, vector<1x8xf32>
    %123 = vector.broadcast %121 : vector<8x1xf32> to vector<8x8xf32>
    %124 = vector.broadcast %122 : vector<1x8xf32> to vector<8x8xf32>
    %125 = arith.subf %123, %124 : vector<8x8xf32>
    %126 = math.absf %125 : vector<8x8xf32>
    %cst_51 = arith.constant 1.000000e+00 : f32
    %127 = vector.broadcast %cst_51 : f32 to vector<8x8xf32>
    %128 = arith.cmpf olt, %126, %127 : vector<8x8xf32>
    %cst_52 = arith.constant 5.000000e-01 : f32
    %129 = vector.broadcast %cst_52 : f32 to vector<8x8xf32>
    %130 = arith.mulf %129, %125 : vector<8x8xf32>
    %131 = arith.mulf %130, %125 : vector<8x8xf32>
    %cst_53 = arith.constant 5.000000e-01 : f32
    %132 = vector.broadcast %cst_53 : f32 to vector<8x8xf32>
    %133 = arith.subf %126, %132 : vector<8x8xf32>
    %134 = arith.select %128, %131, %133 : vector<8x8xi1>, vector<8x8xf32>
    %135 = arith.addf %120, %134 : vector<8x8xf32>
    %cst_54 = arith.constant 0.111111112 : f32
    %136 = vector.broadcast %cst_54 : f32 to vector<8x8xf32>
    %137 = arith.mulf %135, %136 : vector<8x8xf32>
    %c0_55 = arith.constant 0 : index
    %c0_56 = arith.constant 0 : index
    %138 = vector.load %arg4[%c0_55, %c0_56] : memref<8x8xf32, #tpu.memory_space<vmem>>, vector<8x8xf32>
    tpu.vector_store %arg4[%c0_55, %c0_56], %137 {strides = array<i32>} : memref<8x8xf32, #tpu.memory_space<vmem>>, vector<8x8xf32>,
    return
  }
  func.func @transform_0(%arg0: i32, %arg1: i32) -> (i32, i32) {
    %c0_i32 = arith.constant 0 : i32
    %c0_i32_0 = arith.constant 0 : i32
    return %arg0, %c0_i32 : i32, i32
  }
  func.func @transform_1(%arg0: i32, %arg1: i32) -> (i32, i32) {
    %c0_i32 = arith.constant 0 : i32
    %c0_i32_0 = arith.constant 0 : i32
    return %c0_i32, %arg1 : i32, i32
  }
  func.func @transform_2(%arg0: i32, %arg1: i32) -> (i32, i32) {
    %c0_i32 = arith.constant 0 : i32
    return %arg0, %arg1 : i32, i32
  }
}

</mosaic_0001>

<llo_original>
// kernel: tpu_custom_call.1
$region0: #{tpu_custom_call.1}
  #allocation0 [shape = 'u32[]', space=smem, size = 0x4, offset = 0x4, fixed_abs, tag = 'smem constant byte address 0x4 - core index']
  #allocation1 [shape = 'u32[144,128]{1,0:T(1,128)}', space=vmem, size = 0x12000, scoped, tag = 'internal scratch']
  %s0 = inlined_call_operand.vmem [shape: f32[8,9], index: 0, kind: input, shape index: {}]
  %s1 = inlined_call_operand.vmem [shape: f32[9,8], index: 1, kind: input, shape index: {}]
  %s2 = inlined_call_operand.hbm [shape: f32[8,8], index: 2, kind: output, shape index: {}]
  %s3 = sld [smem:[#allocation0]]
  $region18: #{tpu_custom_call.1} parent=0
    _
  %s5 = ssub.s32 1, %s3
  %s6 = scalar_select 0, %s5, %s3
  $region1: #{tpu_custom_call.1} parent=0
    #allocation2 [shape = 'u8[4096]{0}', space=vmem, size = 0x1000, scoped, tag = 'output window, operand 0, single buffered']
    #allocation3 [shape = 's32[1]{0}', space=sflag, size = 0x4, scoped, tag = 'scoped memory for tpu_custom_call.1']
    %7 = vsyncpa [#allocation3], 0
    // Predicated region
    $region2: #{tpu_custom_call.1} parent=1 // pred_check
      _
    $region3: #{tpu_custom_call.1} parent=1 // pred_check_branch
      %9 = sbr.rel (0) target = $region5
    $region4: #{tpu_custom_call.1} parent=1 // pred_region
      _
    $region5: #{tpu_custom_call.1} parent=1 // pred_fallthru
      _
    // Predicated region
    $region6: #{tpu_custom_call.1} parent=1 // pred_check
      _
    $region7: #{tpu_custom_call.1} parent=1 // pred_check_branch
      %11 = sbr.rel (0) target = $region9
    $region8: #{tpu_custom_call.1} parent=1 // pred_region
      _
    $region9: #{tpu_custom_call.1} parent=1 // pred_fallthru
      _
    %v12 = vld [vmem:[%s0] sm:$0xff]
    %v13 = vld [vmem:[%s1] sm:$0x1]
    %15 = vset.pattern.permute.xlu0 0
    %16 = vperm.xlu0 %15, %v12
    %v17 = vpop.permute.xlu0 %16
    %v19 = vlaneseq
    %v20 = vshrl.u32 %v19, 7
    %v21 = vsub.s32 0, %v20
    %v22 = vrot.slane %v13, %v21
    %v23 = vsub.f32 %v17, %v22
    %v24 = vand.u32 2147483647, %v23
    %vm25 = vcmp.lt.f32.partialorder %v24, 1.0
    %v26 = vmul.f32 %v23, 0.5
    %v27 = vmul.f32 %v26, %v23
    %v28 = vsub.f32 %v24, 0.5
    %v29 = vsel %vm25, %v27, %v28
    %v30 = vadd.f32 %v29, 0.0
    %v31 = vld [vmem:[%s1 + $0x1] sm:$0x1]
    %32 = vset.pattern.permute.xlu0 1
    %33 = vperm.xlu0 %32, %v12
    %v34 = vpop.permute.xlu0 %33
    %v36 = vlaneseq
    %v37 = vshrl.u32 %v36, 7
    %v38 = vsub.s32 0, %v37
    %v39 = vrot.slane %v31, %v38
    %v40 = vsub.f32 %v34, %v39
    %v41 = vand.u32 2147483647, %v40
    %vm42 = vcmp.lt.f32.partialorder %v41, 1.0
    %v43 = vmul.f32 %v40, 0.5
    %v44 = vmul.f32 %v43, %v40
    %v45 = vsub.f32 %v41, 0.5
    %v46 = vsel %vm42, %v44, %v45
    %v47 = vadd.f32 %v30, %v46
    %v48 = vld [vmem:[%s1 + $0x2] sm:$0x1]
    %49 = vset.pattern.permute.xlu0 2
    %50 = vperm.xlu0 %49, %v12
    %v51 = vpop.permute.xlu0 %50
    %v53 = vlaneseq
    %v54 = vshrl.u32 %v53, 7
    %v55 = vsub.s32 0, %v54
    %v56 = vrot.slane %v48, %v55
    %v57 = vsub.f32 %v51, %v56
    %v58 = vand.u32 2147483647, %v57
    %vm59 = vcmp.lt.f32.partialorder %v58, 1.0
    %v60 = vmul.f32 %v57, 0.5
    %v61 = vmul.f32 %v60, %v57
    %v62 = vsub.f32 %v58, 0.5
    %v63 = vsel %vm59, %v61, %v62
    %v64 = vadd.f32 %v47, %v63
    %v65 = vld [vmem:[%s1 + $0x3] sm:$0x1]
    %66 = vset.pattern.permute.xlu0 3
    %67 = vperm.xlu0 %66, %v12
    %v68 = vpop.permute.xlu0 %67
    %v70 = vlaneseq
    %v71 = vshrl.u32 %v70, 7
    %v72 = vsub.s32 0, %v71
    %v73 = vrot.slane %v65, %v72
    %v74 = vsub.f32 %v68, %v73
    %v75 = vand.u32 2147483647, %v74
    %vm76 = vcmp.lt.f32.partialorder %v75, 1.0
    %v77 = vmul.f32 %v74, 0.5
    %v78 = vmul.f32 %v77, %v74
    %v79 = vsub.f32 %v75, 0.5
    %v80 = vsel %vm76, %v78, %v79
    %v81 = vadd.f32 %v64, %v80
    %v82 = vld [vmem:[%s1 + $0x4] sm:$0x1]
    %83 = vset.pattern.permute.xlu0 4
    %84 = vperm.xlu0 %83, %v12
    %v85 = vpop.permute.xlu0 %84
    %v87 = vlaneseq
    %v88 = vshrl.u32 %v87, 7
    %v89 = vsub.s32 0, %v88
    %v90 = vrot.slane %v82, %v89
    %v91 = vsub.f32 %v85, %v90
    %v92 = vand.u32 2147483647, %v91
    %vm93 = vcmp.lt.f32.partialorder %v92, 1.0
    %v94 = vmul.f32 %v91, 0.5
    %v95 = vmul.f32 %v94, %v91
    %v96 = vsub.f32 %v92, 0.5
    %v97 = vsel %vm93, %v95, %v96
    %v98 = vadd.f32 %v81, %v97
    %v99 = vld [vmem:[%s1 + $0x5] sm:$0x1]
    %100 = vset.pattern.permute.xlu0 5
    %101 = vperm.xlu0 %100, %v12
    %v102 = vpop.permute.xlu0 %101
    %v104 = vlaneseq
    %v105 = vshrl.u32 %v104, 7
    %v106 = vsub.s32 0, %v105
    %v107 = vrot.slane %v99, %v106
    %v108 = vsub.f32 %v102, %v107
    %v109 = vand.u32 2147483647, %v108
    %vm110 = vcmp.lt.f32.partialorder %v109, 1.0
    %v111 = vmul.f32 %v108, 0.5
    %v112 = vmul.f32 %v111, %v108
    %v113 = vsub.f32 %v109, 0.5
    %v114 = vsel %vm110, %v112, %v113
    %v115 = vadd.f32 %v98, %v114
    %v116 = vld [vmem:[%s1 + $0x6] sm:$0x1]
    %117 = vset.pattern.permute.xlu0 6
    %118 = vperm.xlu0 %117, %v12
    %v119 = vpop.permute.xlu0 %118
    %v121 = vlaneseq
    %v122 = vshrl.u32 %v121, 7
    %v123 = vsub.s32 0, %v122
    %v124 = vrot.slane %v116, %v123
    %v125 = vsub.f32 %v119, %v124
    %v126 = vand.u32 2147483647, %v125
    %vm127 = vcmp.lt.f32.partialorder %v126, 1.0
    %v128 = vmul.f32 %v125, 0.5
    %v129 = vmul.f32 %v128, %v125
    %v130 = vsub.f32 %v126, 0.5
    %v131 = vsel %vm127, %v129, %v130
    %v132 = vadd.f32 %v115, %v131
    %v133 = vld [vmem:[%s1 + $0x7] sm:$0x1]
    %134 = vset.pattern.permute.xlu0 7
    %135 = vperm.xlu0 %134, %v12
    %v136 = vpop.permute.xlu0 %135
    %v138 = vlaneseq
    %v139 = vshrl.u32 %v138, 7
    %v140 = vsub.s32 0, %v139
    %v141 = vrot.slane %v133, %v140
    %v142 = vsub.f32 %v136, %v141
    %v143 = vand.u32 2147483647, %v142
    %vm144 = vcmp.lt.f32.partialorder %v143, 1.0
    %v145 = vmul.f32 %v142, 0.5
    %v146 = vmul.f32 %v145, %v142
    %v147 = vsub.f32 %v143, 0.5
    %v148 = vsel %vm144, %v146, %v147
    %v149 = vadd.f32 %v132, %v148
    %v150 = vld [vmem:[%s1 + $0x8] sm:$0x1]
    %151 = vset.pattern.permute.xlu0 8
    %152 = vperm.xlu0 %151, %v12
    %v153 = vpop.permute.xlu0 %152
    %v155 = vlaneseq
    %v156 = vshrl.u32 %v155, 7
    %v157 = vsub.s32 0, %v156
    %v158 = vrot.slane %v150, %v157
    %v159 = vsub.f32 %v153, %v158
    %v160 = vand.u32 2147483647, %v159
    %vm161 = vcmp.lt.f32.partialorder %v160, 1.0
    %v162 = vmul.f32 %v159, 0.5
    %v163 = vmul.f32 %v162, %v159
    %v164 = vsub.f32 %v160, 0.5
    %v165 = vsel %vm161, %v163, %v164
    %v166 = vadd.f32 %v149, %v165
    %v167 = vmul.f32 %v166, 0.11111111
    %vm168 = vcmask 64512
    %169 = vst.msk [vmem:[#allocation2] sm:$0xff] %vm168, %v167
    // Predicated region
    $region10: #{tpu_custom_call.1} parent=1 // pred_check
      _
    $region11: #{tpu_custom_call.1} parent=1 // pred_check_branch
      %171 = sbr.rel (0) target = $region13
    $region12: #{tpu_custom_call.1} parent=1 // pred_region
      %s173 = ssub.s32 128, 128
      %174 = vsyncadd [#allocation3], %s173
      %s176 = sshll.u32 [#allocation2], 4
      %s177 = int_to_ptr.vmem [resolvable:$true] %s176
      %179 = dma.vmem_to_hbm [thread:$0]  %s177, 128, %s2, [#allocation3]
    $region13: #{tpu_custom_call.1} parent=1 // pred_fallthru
      _
    // Predicated region
    $region14: #{tpu_custom_call.1} parent=1 // pred_check
      _
    $region15: #{tpu_custom_call.1} parent=1 // pred_check_branch
      %181 = sbr.rel (0) target = $region17
    $region16: #{tpu_custom_call.1} parent=1 // pred_region
      %182 = dma.done [#allocation3], 128
    $region17: #{tpu_custom_call.1} parent=1 // pred_fallthru
      _
    %183 = vsyncpa [#allocation3], 1

</llo_original>
